<compile_context>
chip_gen: v7x
topology: tpu7x:2x2x1
jax: 0.10.0
libtpu: 0.0.40
codegen_flags: <defaults>
</compile_context>

<pallas_src>
import functools

import jax
import jax.numpy as jnp
from jax import lax
from jax.experimental import pallas as pl
from jax.experimental.pallas import tpu as pltpu


def _round_up(x, m):
    return (x + m - 1) // m * m


def _round_down(x, m):
    return (x // m) * m


def _cdiv(a, b):
    return (a + b - 1) // b


def _sublane_tile(dtype):
    # Packed sublane tile: 8 rows for 4-byte, 16 for 2-byte, 32 for 1-byte.
    return {4: 8, 2: 16, 1: 32}.get(jnp.dtype(dtype).itemsize, 8)


def _attn_pool_kernel(x_ref, w_ref, o_ref, m_sc, l_sc, acc_sc, *,
                      seq_len, blk_t, sub_t, n_sub, mask_seq):
    """One (batch_block, seq_block) grid step of attention pooling.

    x_ref:  (BB, blk_t, D) VMEM, native dtype
    w_ref:  (1, D)         VMEM, f32
    o_ref:  (BB, D)        VMEM, written once on the last seq block
    m_sc, l_sc: (BB, 1) f32 running softmax max / denominator
    acc_sc:     (BB, D) f32 running weighted sum
    """
    bb = x_ref.shape[0]
    ti = pl.program_id(1)

    @pl.when(ti == 0)
    def _init():
        m_sc[...] = jnp.full(m_sc.shape, -jnp.inf, dtype=m_sc.dtype)
        l_sc[...] = jnp.zeros(l_sc.shape, dtype=l_sc.dtype)
        acc_sc[...] = jnp.zeros(acc_sc.shape, dtype=acc_sc.dtype)

    w_row = w_ref[0].astype(jnp.float32)                         # (D,)

    def process(s):
        # s: sub-slab index inside this seq block (python int or traced int32).
        start = s * sub_t
        if not isinstance(start, int):
            start = pl.multiple_of(start, sub_t)
        # f32 sub-slab: exact f32 products + accumulation for every input
        # dtype (VPU path for all dtypes; M=1 MXU einsum dropped per review).
        xs = x_ref[:, pl.ds(start, sub_t), :].astype(jnp.float32)  # (BB,TS,D)

        if mask_seq:
            # Ragged T tail: zero out-of-range rows of the slab (so undefined
            # padded-block data cannot leak via 0*inf/NaN) and force their
            # logits to -inf so they get zero softmax weight.
            t_ids = ti * blk_t + start + lax.broadcasted_iota(
                jnp.int32, (bb, sub_t), 1)                         # (BB,TS)
            valid = t_ids < seq_len
            xs = jnp.where(valid[:, :, None], xs, 0.0)

        # Lane-dense logits: VPU multiply + lane reduction (f32 accumulate).
        logits = jnp.sum(xs * w_row, axis=-1)                      # (BB,TS)
        if mask_seq:
            logits = jnp.where(valid, logits, -jnp.inf)

        # Online (streaming) softmax update over the sequence axis.
        m_prev = m_sc[...]                                         # (BB,1)
        m_new = jnp.maximum(m_prev, jnp.max(logits, axis=-1, keepdims=True))
        alpha = jnp.exp(m_prev - m_new)                            # (BB,1)
        p = jnp.exp(logits - m_new)                                # (BB,TS)
        l_sc[...] = alpha * l_sc[...] + jnp.sum(p, axis=-1, keepdims=True)
        # Weighted sum for this sub-slab: VPU multiply + sublane reduction.
        acc_sc[...] = alpha * acc_sc[...] + jnp.sum(xs * p[:, :, None], axis=1)
        m_sc[...] = m_new

    if n_sub == 1:
        process(0)
    else:
        def body(s, carry):
            process(s)
            return carry
        lax.fori_loop(0, n_sub, body, 0)

    @pl.when(ti == pl.num_programs(1) - 1)
    def _finalize():
        o_ref[...] = (acc_sc[...] / l_sc[...]).astype(o_ref.dtype)


def attention_pooling(x, w, b=None, *, block_b=None, block_t=None,
                      sub_block_t=None,
                      x_block_budget_bytes=32 * 1024 * 1024):
    """AttentionPooling forward: sum_T(x * softmax(x @ w.T + b, axis=1)).

    x: (B, T, D); w: (1, D) or (D,) = nn.Linear(D, 1).weight; b: (1,) = bias.
    The bias is accepted for API parity but never used: softmax over the
    sequence axis is shift-invariant, so adding the same scalar everywhere is
    a mathematical no-op.
    """
    del b  # softmax shift invariance -> bias never changes the output
    B, T, D = x.shape
    out_dtype = x.dtype
    itemsize = jnp.dtype(x.dtype).itemsize
    w = jnp.asarray(w, dtype=jnp.float32).reshape(1, D)

    # ---- batch block: match the output dtype's packed sublane tile so the
    # (BB, D) output store is a full unmasked tile (8 f32 / 16 bf16 / 32 i8).
    bb_tile = _sublane_tile(out_dtype)
    BB = block_b if block_b is not None else (bb_tile if B >= bb_tile else B)
    nb = _cdiv(B, BB)
    B_pad = nb * BB        # only the (tiny) output array is padded, never x.

    # ---- VMEM capacity (v5e/v6e: 128 MiB, v7x: 64 MiB); keep ~25% headroom.
    try:
        vmem_cap = int(pltpu.get_tpu_info().vmem_capacity_bytes)
    except Exception:
        vmem_cap = 64 * 1024 * 1024
    vmem_usable = (vmem_cap * 3) // 4

    # ---- sub-slab (in-kernel compute granularity): bounded f32 temporaries.
    t_tile = _sublane_tile(x.dtype)
    if sub_block_t is not None:
        TS = sub_block_t
    else:
        TS = max(t_tile, _round_down((512 * 1024) // (BB * D * 4), t_tile))
        TS = min(TS, _round_up(T, t_tile))

    # ---- fixed VMEM besides the double-buffered x blocks.
    d_pad = _round_up(D, 128)
    bb_pad = _round_up(BB, 8)
    fixed_bytes = (2 * bb_pad * d_pad * jnp.dtype(out_dtype).itemsize  # out db
                   + 2 * 8 * d_pad * 4                                 # w db
                   + bb_pad * d_pad * 4                                # acc
                   + 2 * bb_pad * 128 * 4                              # m, l
                   + 4 * BB * TS * D * 4                               # temps
                   + 4 * 1024 * 1024)                                  # headroom

    # ---- seq block (DMA granularity): as large as budget / VMEM allow.
    per_block = min(x_block_budget_bytes,
                    max(BB * TS * D * itemsize,
                        (vmem_usable - fixed_bytes) // 2))
    if block_t is not None:
        TT = block_t
    else:
        TT = max(TS, _round_down(per_block // (BB * D * itemsize), TS))
        TT = min(TT, _round_up(T, TS))
    if TT % TS != 0:
        raise ValueError(f"block_t={TT} must be a multiple of sub_block_t={TS}")
    n_sub = TT // TS
    nt = _cdiv(T, TT)
    mask_seq = (nt * TT != T)      # ragged T tail -> in-kernel masking

    vmem_limit = 2 * BB * TT * D * itemsize + fixed_bytes
    vmem_limit = int(min(max(vmem_limit, 16 * 1024 * 1024), vmem_usable))

    kernel = functools.partial(
        _attn_pool_kernel, seq_len=T, blk_t=TT, sub_t=TS, n_sub=n_sub,
        mask_seq=mask_seq)

    # TODO(synk): when nb == 1 on v7x (2 TensorCores/chip) the second core
    # idles; sharding the seq axis across cores needs per-core (m, l, acc)
    # partials plus a small combine pass.
    out = pl.pallas_call(
        kernel,
        out_shape=jax.ShapeDtypeStruct((B_pad, D), out_dtype),
        grid_spec=pltpu.PrefetchScalarGridSpec(
            num_scalar_prefetch=0,
            grid=(nb, nt),
            in_specs=[
                pl.BlockSpec((BB, TT, D), lambda bi, ti: (bi, ti, 0)),
                pl.BlockSpec((1, D), lambda bi, ti: (0, 0)),
            ],
            out_specs=pl.BlockSpec((BB, D), lambda bi, ti: (bi, 0)),
            scratch_shapes=[
                pltpu.VMEM((BB, 1), jnp.float32),   # running max  m
                pltpu.VMEM((BB, 1), jnp.float32),   # running denom l
                pltpu.VMEM((BB, D), jnp.float32),   # running weighted sum
            ],
        ),
        compiler_params=pltpu.CompilerParams(
            dimension_semantics=("parallel", "arbitrary"),
            vmem_limit_bytes=vmem_limit,
        ),
    )(x, w)
    return out[:B] if B_pad != B else out


def _reference(x, w, b):
    xf = jnp.asarray(x, jnp.float32)
    wf = jnp.asarray(w, jnp.float32).reshape(1, 1, -1)
    logits = jnp.sum(xf * wf, axis=-1, keepdims=True)
    if b is not None:
        logits = logits + jnp.asarray(b, jnp.float32).reshape(-1)[0]
    attn = jax.nn.softmax(logits, axis=1)
    return jnp.sum(xf * attn, axis=1)


if __name__ == "__main__":
    key = jax.random.PRNGKey(0)

    # --- Test 1: nominal small shape (batch=2, seq=8, hidden=32), float32.
    k1, k2, k3, key = jax.random.split(key, 4)
    B, T, D = 2, 8, 32
    x = jax.random.normal(k1, (B, T, D), dtype=jnp.float32)
    w = jax.random.normal(k2, (1, D), dtype=jnp.float32) * 0.1
    b = jax.random.normal(k3, (1,), dtype=jnp.float32) * 0.1
    out = jax.block_until_ready(attention_pooling(x, w, b))
    ref = _reference(x, w, b)
    assert out.shape == (B, D) and out.dtype == x.dtype
    assert jnp.allclose(out, ref, atol=1e-5, rtol=1e-5)

    # --- Test 2: ragged batch (B % 8 != 0), multiple seq blocks, sub-slab
    #     loop, masked ragged T tail.  float32.
    k1, k2, k3, key = jax.random.split(key, 4)
    B, T, D = 10, 56, 128
    x = jax.random.normal(k1, (B, T, D), dtype=jnp.float32)
    w = jax.random.normal(k2, (1, D), dtype=jnp.float32) * 0.1
    b = jax.random.normal(k3, (1,), dtype=jnp.float32) * 0.1
    out = jax.block_until_ready(
        attention_pooling(x, w, b, block_b=8, block_t=16, sub_block_t=8))
    ref = _reference(x, w, b)
    assert out.shape == (B, D)
    assert jnp.allclose(out, ref, atol=1e-4, rtol=1e-4)

    # --- Test 3: bfloat16 inputs/outputs (f32 accumulation inside the kernel).
    k1, k2, key = jax.random.split(key, 3)
    B, T, D = 4, 48, 128
    xb = (jax.random.normal(k1, (B, T, D), dtype=jnp.float32)
          ).astype(jnp.bfloat16)
    w = jax.random.normal(k2, (1, D), dtype=jnp.float32) * 0.1
    b = jnp.zeros((1,), jnp.float32)
    out = jax.block_until_ready(attention_pooling(xb, w, b))
    ref = _reference(xb, w, b)
    assert out.shape == (B, D) and out.dtype == jnp.bfloat16
    assert jnp.allclose(out.astype(jnp.float32), ref, atol=3e-2, rtol=3e-2)

    print("KERNEL_OK")
</pallas_src>

<mosaic_0001>
module attributes {stable_mosaic.version = 11 : i64} {
  func.func @_attn_pool_kernel(%arg0: i32, %arg1: i32, %arg2: memref<2x8x32xf32, #tpu.memory_space<vmem>>, %arg3: memref<1x32xf32, #tpu.memory_space<vmem>>, %arg4: memref<2x32xf32, #tpu.memory_space<vmem>>, %arg5: memref<2x1xf32, #tpu.memory_space<vmem>>, %arg6: memref<2x1xf32, #tpu.memory_space<vmem>>, %arg7: memref<2x32xf32, #tpu.memory_space<vmem>>) attributes {dimension_semantics = [#tpu.dimension_semantics<parallel>, #tpu.dimension_semantics<arbitrary>], iteration_bounds = array<i64: 1, 1>, scalar_prefetch = 0 : i64, scratch_operands = 3 : i64, tpu.core_type = #tpu.core_type<tc>, window_params = [{transform_indices = @transform_0, window_bounds = array<i64: 2, 8, 32>}, {pipeline_mode = #tpu.pipeline_mode<synchronous>, transform_indices = @transform_1, window_bounds = array<i64: 1, 32>}, {transform_indices = @transform_2, window_bounds = array<i64: 2, 32>}]} {
    %c0_i32 = arith.constant 0 : i32
    %0 = arith.cmpi eq, %arg1, %c0_i32 : i32
    %1 = arith.extui %0 : i1 to i32
    %c0_i32_0 = arith.constant 0 : i32
    %2 = arith.cmpi ne, %1, %c0_i32_0 : i32
    scf.if %2 {
      %cst_22 = arith.constant 0xFF800000 : f32
      %38 = vector.broadcast %cst_22 : f32 to vector<2x1xf32>
      %c0_23 = arith.constant 0 : index
      %c0_24 = arith.constant 0 : index
      %39 = vector.load %arg5[%c0_23, %c0_24] : memref<2x1xf32, #tpu.memory_space<vmem>>, vector<2x1xf32>
      tpu.vector_store %arg5[%c0_23, %c0_24], %38 {strides = array<i32>} : memref<2x1xf32, #tpu.memory_space<vmem>>, vector<2x1xf32>,
      %cst_25 = arith.constant 0.000000e+00 : f32
      %40 = vector.broadcast %cst_25 : f32 to vector<2x1xf32>
      %c0_26 = arith.constant 0 : index
      %c0_27 = arith.constant 0 : index
      %41 = vector.load %arg6[%c0_26, %c0_27] : memref<2x1xf32, #tpu.memory_space<vmem>>, vector<2x1xf32>
      tpu.vector_store %arg6[%c0_26, %c0_27], %40 {strides = array<i32>} : memref<2x1xf32, #tpu.memory_space<vmem>>, vector<2x1xf32>,
      %cst_28 = arith.constant 0.000000e+00 : f32
      %42 = vector.broadcast %cst_28 : f32 to vector<2x32xf32>
      %c0_29 = arith.constant 0 : index
      %c0_30 = arith.constant 0 : index
      %43 = vector.load %arg7[%c0_29, %c0_30] : memref<2x32xf32, #tpu.memory_space<vmem>>, vector<2x32xf32>
      tpu.vector_store %arg7[%c0_29, %c0_30], %42 {strides = array<i32>} : memref<2x32xf32, #tpu.memory_space<vmem>>, vector<2x32xf32>,
    } else {
    }
    %c0 = arith.constant 0 : index
    %c0_1 = arith.constant 0 : index
    %3 = vector.load %arg3[%c0, %c0_1] : memref<1x32xf32, #tpu.memory_space<vmem>>, vector<1x32xf32>
    %4 = vector.shape_cast %3 : vector<1x32xf32> to vector<32xf32>
    %c0_2 = arith.constant 0 : index
    %c0_3 = arith.constant 0 : index
    %c0_4 = arith.constant 0 : index
    %5 = vector.load %arg2[%c0_2, %c0_3, %c0_4] : memref<2x8x32xf32, #tpu.memory_space<vmem>>, vector<2x8x32xf32>
    %6 = vector.shape_cast %4 : vector<32xf32> to vector<1x1x32xf32>
    %7 = vector.broadcast %6 : vector<1x1x32xf32> to vector<2x8x32xf32>
    %8 = arith.mulf %5, %7 : vector<2x8x32xf32>
    %cst = arith.constant dense<0.000000e+00> : vector<2x8xf32>
    %9 = vector.multi_reduction <add>, %8, %cst [2] : vector<2x8x32xf32> to vector<2x8xf32>
    %c0_5 = arith.constant 0 : index
    %c0_6 = arith.constant 0 : index
    %10 = vector.load %arg5[%c0_5, %c0_6] : memref<2x1xf32, #tpu.memory_space<vmem>>, vector<2x1xf32>
    %cst_7 = arith.constant dense<0xFF800000> : vector<2xf32>
    %11 = vector.multi_reduction <maximumf>, %9, %cst_7 [1] : vector<2x8xf32> to vector<2xf32>
    %12 = vector.shape_cast %11 : vector<2xf32> to vector<2x1xf32>
    %13 = arith.maximumf %10, %12 : vector<2x1xf32>
    %14 = arith.subf %10, %13 : vector<2x1xf32>
    %15 = math.exp %14 : vector<2x1xf32>
    %16 = vector.broadcast %13 : vector<2x1xf32> to vector<2x8xf32>
    %17 = arith.subf %9, %16 : vector<2x8xf32>
    %18 = math.exp %17 : vector<2x8xf32>
    %c0_8 = arith.constant 0 : index
    %c0_9 = arith.constant 0 : index
    %19 = vector.load %arg6[%c0_8, %c0_9] : memref<2x1xf32, #tpu.memory_space<vmem>>, vector<2x1xf32>
    %20 = arith.mulf %15, %19 : vector<2x1xf32>
    %cst_10 = arith.constant dense<0.000000e+00> : vector<2xf32>
    %21 = vector.multi_reduction <add>, %18, %cst_10 [1] : vector<2x8xf32> to vector<2xf32>
    %22 = vector.shape_cast %21 : vector<2xf32> to vector<2x1xf32>
    %23 = arith.addf %20, %22 : vector<2x1xf32>
    %c0_11 = arith.constant 0 : index
    %c0_12 = arith.constant 0 : index
    %24 = vector.load %arg6[%c0_11, %c0_12] : memref<2x1xf32, #tpu.memory_space<vmem>>, vector<2x1xf32>
    tpu.vector_store %arg6[%c0_11, %c0_12], %23 {strides = array<i32>} : memref<2x1xf32, #tpu.memory_space<vmem>>, vector<2x1xf32>,
    %c0_13 = arith.constant 0 : index
    %c0_14 = arith.constant 0 : index
    %25 = vector.load %arg7[%c0_13, %c0_14] : memref<2x32xf32, #tpu.memory_space<vmem>>, vector<2x32xf32>
    %26 = vector.broadcast %15 : vector<2x1xf32> to vector<2x32xf32>
    %27 = arith.mulf %26, %25 : vector<2x32xf32>
    %28 = vector.shape_cast %18 : vector<2x8xf32> to vector<2x8x1xf32>
    %29 = vector.broadcast %28 : vector<2x8x1xf32> to vector<2x8x32xf32>
    %30 = arith.mulf %5, %29 : vector<2x8x32xf32>
    %cst_15 = arith.constant dense<0.000000e+00> : vector<2x32xf32>
    %31 = vector.multi_reduction <add>, %30, %cst_15 [1] : vector<2x8x32xf32> to vector<2x32xf32>
    %32 = arith.addf %27, %31 : vector<2x32xf32>
    %c0_16 = arith.constant 0 : index
    %c0_17 = arith.constant 0 : index
    %33 = vector.load %arg7[%c0_16, %c0_17] : memref<2x32xf32, #tpu.memory_space<vmem>>, vector<2x32xf32>
    tpu.vector_store %arg7[%c0_16, %c0_17], %32 {strides = array<i32>} : memref<2x32xf32, #tpu.memory_space<vmem>>, vector<2x32xf32>,
    %c0_18 = arith.constant 0 : index
    %c0_19 = arith.constant 0 : index
    %34 = vector.load %arg5[%c0_18, %c0_19] : memref<2x1xf32, #tpu.memory_space<vmem>>, vector<2x1xf32>
    tpu.vector_store %arg5[%c0_18, %c0_19], %13 {strides = array<i32>} : memref<2x1xf32, #tpu.memory_space<vmem>>, vector<2x1xf32>,
    %c0_i32_20 = arith.constant 0 : i32
    %35 = arith.cmpi eq, %arg1, %c0_i32_20 : i32
    %36 = arith.extui %35 : i1 to i32
    %c0_i32_21 = arith.constant 0 : i32
    %37 = arith.cmpi ne, %36, %c0_i32_21 : i32
    scf.if %37 {
      %c0_22 = arith.constant 0 : index
      %c0_23 = arith.constant 0 : index
      %38 = vector.load %arg7[%c0_22, %c0_23] : memref<2x32xf32, #tpu.memory_space<vmem>>, vector<2x32xf32>
      %c0_24 = arith.constant 0 : index
      %c0_25 = arith.constant 0 : index
      %39 = vector.load %arg6[%c0_24, %c0_25] : memref<2x1xf32, #tpu.memory_space<vmem>>, vector<2x1xf32>
      %40 = vector.broadcast %39 : vector<2x1xf32> to vector<2x32xf32>
      %41 = arith.divf %38, %40 : vector<2x32xf32>
      %c0_26 = arith.constant 0 : index
      %c0_27 = arith.constant 0 : index
      %42 = vector.load %arg4[%c0_26, %c0_27] : memref<2x32xf32, #tpu.memory_space<vmem>>, vector<2x32xf32>
      tpu.vector_store %arg4[%c0_26, %c0_27], %41 {strides = array<i32>} : memref<2x32xf32, #tpu.memory_space<vmem>>, vector<2x32xf32>,
    } else {
    }
    return
  }
  func.func @transform_0(%arg0: i32, %arg1: i32) -> (i32, i32, i32) {
    %c0_i32 = arith.constant 0 : i32
    %c0_i32_0 = arith.constant 0 : i32
    return %arg0, %arg1, %c0_i32 : i32, i32, i32
  }
  func.func @transform_1(%arg0: i32, %arg1: i32) -> (i32, i32) {
    %c0_i32 = arith.constant 0 : i32
    %c0_i32_0 = arith.constant 0 : i32
    %c0_i32_1 = arith.constant 0 : i32
    return %c0_i32, %c0_i32_0 : i32, i32
  }
  func.func @transform_2(%arg0: i32, %arg1: i32) -> (i32, i32) {
    %c0_i32 = arith.constant 0 : i32
    %c0_i32_0 = arith.constant 0 : i32
    return %arg0, %c0_i32 : i32, i32
  }
}

</mosaic_0001>

<llo_original>
// kernel: tpu_custom_call.1
$region0: #{tpu_custom_call.1}
  #allocation0 [shape = 'u32[]', space=smem, size = 0x4, offset = 0x4, fixed_abs, tag = 'smem constant byte address 0x4 - core index']
  #allocation1 [shape = 'u32[144,128]{1,0:T(1,128)}', space=vmem, size = 0x12000, scoped, tag = 'internal scratch']
  #allocation2 [shape = 'f32[2,1]{1,0:T(2,128)}', space=vmem, size = 0x400, scoped, tag = 'scratch operand']
  #allocation3 [shape = 'f32[2,1]{1,0:T(2,128)}', space=vmem, size = 0x400, scoped, tag = 'scratch operand']
  #allocation4 [shape = 'f32[2,32]{1,0:T(2,128)}', space=vmem, size = 0x400, scoped, tag = 'scratch operand']
  %s0 = inlined_call_operand.hbm [shape: f32[2,8,32], index: 0, kind: input, shape index: {}]
  %s1 = inlined_call_operand.vmem [shape: f32[1,32], index: 1, kind: input, shape index: {}]
  %s2 = inlined_call_operand.hbm [shape: f32[2,32], index: 2, kind: output, shape index: {}]
  %s3 = sld [smem:[#allocation0]]
  $region30: #{tpu_custom_call.1} parent=0
    _
  %s5 = ssub.s32 1, %s3
  %s6 = scalar_select 0, %s5, %s3
  $region1: #{tpu_custom_call.1} parent=0
    #allocation5 [shape = 'u8[8192]{0}', space=vmem, size = 0x2000, scoped, tag = 'input window, operand 0, single buffered']
    #allocation6 [shape = 's32[1]{0}', space=sflag, size = 0x4, scoped, tag = 'scoped memory for tpu_custom_call.1']
    #allocation7 [shape = 's32[1]{0}', space=sflag, size = 0x4, scoped, tag = 'scoped memory for tpu_custom_call.1']
    #allocation8 [shape = 'u8[1024]{0}', space=vmem, size = 0x400, scoped, tag = 'output window, operand 0, single buffered']
    %7 = vsyncpa [#allocation6], 0
    %8 = vsyncpa [#allocation7], 0
    // Predicated region
    $region2: #{tpu_custom_call.1} parent=1 // pred_check
      _
    $region3: #{tpu_custom_call.1} parent=1 // pred_check_branch
      %10 = sbr.rel (0) target = $region5
    $region4: #{tpu_custom_call.1} parent=1 // pred_region
      %s12 = ssub.s32 256, 256
      %13 = vsyncadd [#allocation6], %s12
      %s14 = sshll.u32 [#allocation5], 4
      %s15 = int_to_ptr.vmem [resolvable:$true] %s14
      %20 = dma.hbm_to_vmem [thread:$0]  %s0, 256, %s15, [#allocation6], 128, 128, 8
    $region5: #{tpu_custom_call.1} parent=1 // pred_fallthru
      _
    // Predicated region
    $region6: #{tpu_custom_call.1} parent=1 // pred_check
      _
    $region7: #{tpu_custom_call.1} parent=1 // pred_check_branch
      %22 = sbr.rel (0) target = $region9
    $region8: #{tpu_custom_call.1} parent=1 // pred_region
      _
    $region9: #{tpu_custom_call.1} parent=1 // pred_fallthru
      _
    // Predicated region
    $region10: #{tpu_custom_call.1} parent=1 // pred_check
      _
    $region11: #{tpu_custom_call.1} parent=1 // pred_check_branch
      %24 = sbr.rel (0) target = $region13
    $region12: #{tpu_custom_call.1} parent=1 // pred_region
      %25 = dma.done [#allocation6], 256
    $region13: #{tpu_custom_call.1} parent=1 // pred_fallthru
      _
    %p26 = scmp.eq.s32.totalorder 0, 0
    // Predicated region
    $region14: #{tpu_custom_call.1} parent=1 // pred_check
      %p27 = pneg %p26
    $region15: #{tpu_custom_call.1} parent=1 // pred_check_branch
      %29 = sbr.rel (%p27) target = $region17
    $region16: #{tpu_custom_call.1} parent=1 // pred_region
      %vm30 = vcmask 1024
      %31 = vst.msk [vmem:[#allocation2] sm:$0x3] %vm30, -inf
      %32 = vst.msk [vmem:[#allocation3] sm:$0x3] %vm30, 0.0
      %vm33 = vcmask 254976
      %34 = vst.msk [vmem:[#allocation4] sm:$0x3] %vm33, 0.0
    $region17: #{tpu_custom_call.1} parent=1 // pred_fallthru
      _
    %v35 = vld [vmem:[%s1] sm:$0x1]
    %v36 = vld [vmem:[#allocation5] sm:$0xff]
    %v37 = vld [vmem:[#allocation5 + $0x8] sm:$0xff]
    %v39 = vlaneseq
    %v40 = vshrl.u32 %v39, 7
    %v41 = vsub.s32 0, %v40
    %v42 = vrot.slane %v35, %v41
    %v44 = vmul.f32 %v36, %v42
    %v45 = vmul.f32 %v37, %v42
    %vm46 = vcmask 261120
    %v47 = vsel %vm46, %v44, 0.0
    %48 = vadd.xlane.f32.xlu0 %v47
    %v49 = vpop.xlane.xlu0 %48
    %v50 = vsel %vm46, %v45, 0.0
    %51 = vadd.xlane.f32.xlu0 %v50
    %v52 = vpop.xlane.xlu0 %51
    %v53 = vld [vmem:[#allocation2] sm:$0x3]
    %v56 = vlaneseq
    %v57 = vand.u32 %v56, 127
    %v58 = vlaneseq
    %v59 = vshrl.u32 %v58, 7
    %v60 = vsub.s32 %v57, %v59
    %v61 = vrot.slane %v49, %v60
    %v62 = vlaneseq
    %v63 = vshrl.u32 %v62, 7
    %v64 = vsub.s32 %v57, %v63
    %v65 = vrot.slane %v52, %v64
    %vm66 = vcmask 1041409
    %v67 = vsel %vm66, %v65, %v61
    %vm69 = vcmask 58368
    %v70 = vsel %vm69, %v67, -inf
    %71 = vmax.xlane.f32.xlu0 %v70
    %v72 = vpop.xlane.xlu0 %71
    %v73 = vmax.f32 %v53, %v72
    %v74 = vsub.f32 %v53, %v73
    %v75 = vmul.f32 %v74, 1.442695
    %v76 = vpow.pop %v75
    %78 = vset.pattern.permute.xlu0 0
    %79 = vperm.xlu0 %78, %v73
    %v80 = vpop.permute.xlu0 %79
    %v81 = vlaneseq
    %v82 = vshrl.u32 %v81, 7
    %v83 = vsub.s32 0, %v82
    %v84 = vrot.slane %v80, %v83
    %v85 = vlaneseq
    %v86 = vshrl.u32 %v85, 7
    %v87 = vsub.s32 1, %v86
    %v88 = vrot.slane %v80, %v87
    %v91 = vsub.f32 %v49, %v84
    %v92 = vsub.f32 %v52, %v88
    %v93 = vmul.f32 %v91, 1.442695
    %v94 = vpow.pop %v93
    %v95 = vmul.f32 %v92, 1.442695
    %v96 = vpow.pop %v95
    %v97 = vld [vmem:[#allocation3] sm:$0x3]
    %v98 = vmul.f32 %v76, %v97
    %101 = vset.pattern.permute.xlu0 0
    %102 = vperm.xlu0 %101, %v94
    %v103 = vpop.permute.xlu0 %102
    %104 = vset.pattern.permute.xlu0 0
    %105 = vperm.xlu0 %104, %v96
    %v106 = vpop.permute.xlu0 %105
    %v107 = vlaneseq
    %v108 = vshrl.u32 %v107, 7
    %v109 = vsub.s32 %v57, %v108
    %v110 = vrot.slane %v103, %v109
    %v111 = vlaneseq
    %v112 = vshrl.u32 %v111, 7
    %v113 = vsub.s32 %v57, %v112
    %v114 = vrot.slane %v106, %v113
    %v115 = vsel %vm66, %v114, %v110
    %v117 = vsel %vm69, %v115, 0.0
    %118 = vadd.xlane.f32.xlu0 %v117
    %v119 = vpop.xlane.xlu0 %118
    %v120 = vadd.f32 %v98, %v119
    %vm121 = vcmask 1024
    %122 = vst.msk [vmem:[#allocation3] sm:$0x3] %vm121, %v120
    %v123 = vld [vmem:[#allocation4] sm:$0x3]
    %125 = vset.pattern.permute.xlu0 0
    %126 = vperm.xlu0 %125, %v76
    %v127 = vpop.permute.xlu0 %126
    %v129 = vmul.f32 %v127, %v123
    %v132 = vmul.f32 %v36, %v103
    %v133 = vmul.f32 %v37, %v106
    %v134 = vsel %vm46, %v132, 0.0
    %v135 = vrot.slane %v134, 4
    %v136 = vadd.f32 %v134, %v135
    %v137 = vrot.slane %v136, 2
    %v138 = vadd.f32 %v136, %v137
    %v139 = vrot.slane %v138, 1
    %v140 = vadd.f32 %v138, %v139
    %v141 = vsel %vm46, %v133, 0.0
    %v142 = vrot.slane %v141, 4
    %v143 = vadd.f32 %v141, %v142
    %v144 = vrot.slane %v143, 2
    %v145 = vadd.f32 %v143, %v144
    %v146 = vrot.slane %v145, 1
    %v147 = vadd.f32 %v145, %v146
    %v150 = vsel %vm66, %v147, %v140
    %v152 = vadd.f32 %v129, %v150
    %vm153 = vcmask 254976
    %154 = vst.msk [vmem:[#allocation4] sm:$0x3] %vm153, %v152
    %155 = vst.msk [vmem:[#allocation2] sm:$0x3] %vm121, %v73
    // Predicated region
    $region18: #{tpu_custom_call.1} parent=1 // pred_check
      %p156 = pneg %p26
    $region19: #{tpu_custom_call.1} parent=1 // pred_check_branch
      %158 = sbr.rel (%p156) target = $region21
    $region20: #{tpu_custom_call.1} parent=1 // pred_region
      %v159 = vld [vmem:[#allocation4] sm:$0x3]
      %v160 = vld [vmem:[#allocation3] sm:$0x3]
      %162 = vset.pattern.permute.xlu0 0
      %163 = vperm.xlu0 %162, %v160
      %v164 = vpop.permute.xlu0 %163
      %v166 = vrcp.pop %v164
      %v167 = vmul.f32 %v159, %v166
      %168 = vst.msk [vmem:[#allocation8] sm:$0x3] %vm153, %v167
    $region21: #{tpu_custom_call.1} parent=1 // pred_fallthru
      _
    // Predicated region
    $region22: #{tpu_custom_call.1} parent=1 // pred_check
      _
    $region23: #{tpu_custom_call.1} parent=1 // pred_check_branch
      %170 = sbr.rel (0) target = $region25
    $region24: #{tpu_custom_call.1} parent=1 // pred_region
      %s172 = ssub.s32 32, 32
      %173 = vsyncadd [#allocation7], %s172
      %s175 = sshll.u32 [#allocation8], 4
      %s176 = int_to_ptr.vmem [resolvable:$true] %s175
      %178 = dma.vmem_to_hbm [thread:$0]  %s176, 32, %s2, [#allocation7]
    $region25: #{tpu_custom_call.1} parent=1 // pred_fallthru
      _
    // Predicated region
    $region26: #{tpu_custom_call.1} parent=1 // pred_check
      _
    $region27: #{tpu_custom_call.1} parent=1 // pred_check_branch
      %180 = sbr.rel (0) target = $region29
    $region28: #{tpu_custom_call.1} parent=1 // pred_region
      %181 = dma.done [#allocation7], 32
    $region29: #{tpu_custom_call.1} parent=1 // pred_fallthru
      _
    %182 = vsyncpa [#allocation6], 1
    %183 = vsyncpa [#allocation7], 1

</llo_original>
